<compile_context>
chip_gen: v5e
topology: v5e:2x2
jax: 0.10.0
libtpu: 0.0.40
codegen_flags: <defaults>
</compile_context>

<pallas_src>
import functools
import math

import jax
import jax.numpy as jnp
from jax import lax
from jax.experimental import pallas as pl
from jax.experimental.pallas import tpu as pltpu


def _round_up(x, m):
    return ((x + m - 1) // m) * m


def _pick_batch_tile(b_pad, block_b):
    """Largest multiple of 128 <= block_b that divides b_pad, while keeping
    at least min(4, b_pad//128) grid steps (megacore sharding + pipelining)."""
    tb = min(block_b, b_pad)
    tb = max(128, (tb // 128) * 128)
    while b_pad % tb:
        tb -= 128
    min_blocks = min(4, b_pad // 128)
    while b_pad // tb < min_blocks:
        tb -= 128
        while b_pad % tb:
            tb -= 128
    return tb


def actor_kernel(x_ref, w1_ref, b1_ref, w2_ref, b2_ref, w3_ref, b3_ref,
                 o_ref, *, max_action, compute_dtype):
    # x_ref: (tb, S) batch-major tile streamed straight from HBM.
    x = x_ref[...].astype(compute_dtype)

    # Layer 1: w1 (H, S) contracted against x's last dim -> (H, tb).
    # Keeps compute lane-dense (batch on the 128-wide lane axis) without a
    # wrapper-side transpose of the dominant input stream.
    h = lax.dot_general(w1_ref[...], x, (((1,), (1,)), ((), ())),
                        preferred_element_type=jnp.float32)
    h = jnp.maximum(h + b1_ref[...], 0.0)

    # Layer 2: (H, H) @ (H, tb) -> (H, tb); f32 accumulation on the MXU.
    h = jnp.dot(w2_ref[...], h.astype(compute_dtype),
                preferred_element_type=jnp.float32)
    h = jnp.maximum(h + b2_ref[...], 0.0)

    # Layer 3: (A, H) @ (H, tb) -> (A, tb); bias + tanh stay lane-dense f32.
    h = jnp.dot(w3_ref[...], h.astype(compute_dtype),
                preferred_element_type=jnp.float32)
    y = max_action * jnp.tanh(h + b3_ref[...])

    # Batch-major store (tb, A): one small in-kernel transpose instead of an
    # extra XLA transpose pass over the output in HBM.
    o_ref[...] = y.T.astype(o_ref.dtype)


def actor_forward(state, params, max_action, *, block_b=8192,
                  compute_dtype=jnp.float32):
    """state: (B, state_dim). Returns (B, action_dim) f32."""
    w1, b1, w2, b2, w3, b3 = params
    B, state_dim = state.shape
    hidden_dim = w1.shape[0]
    action_dim = w3.shape[0]

    # Pad the batch only to the lane width (128), never to the tile size.
    b_pad = _round_up(B, 128)
    tb = _pick_batch_tile(b_pad, block_b)
    num_blocks = b_pad // tb

    x = state
    if b_pad != B:
        x = jnp.pad(x, ((0, b_pad - B), (0, 0)))

    # Pre-cast the tiny resident weights once (biases stay f32 for the VPU/EUP).
    cd = jnp.dtype(compute_dtype)
    w1c = w1.astype(cd)
    w2c = w2.astype(cd)
    w3c = w3.astype(cd)

    flops = 2 * b_pad * (state_dim * hidden_dim
                         + hidden_dim * hidden_dim
                         + hidden_dim * action_dim)
    bytes_accessed = (b_pad * state_dim * x.dtype.itemsize            # input
                      + b_pad * action_dim * 4                        # output
                      + (state_dim * hidden_dim + hidden_dim * hidden_dim
                         + hidden_dim * action_dim) * cd.itemsize     # weights
                      + (2 * hidden_dim + action_dim) * 4)            # biases
    cost = pl.CostEstimate(flops=flops,
                           transcendentals=b_pad * action_dim,
                           bytes_accessed=bytes_accessed)

    kernel = functools.partial(actor_kernel, max_action=float(max_action),
                               compute_dtype=cd)

    def resident(shape):
        # Same block every grid step -> stays VMEM-resident.
        return pl.BlockSpec(shape, lambda i: (0, 0))

    out = pl.pallas_call(
        kernel,
        out_shape=jax.ShapeDtypeStruct((b_pad, action_dim), jnp.float32),
        grid=(num_blocks,),
        in_specs=[
            pl.BlockSpec((tb, state_dim), lambda i: (i, 0)),   # state tile
            resident((hidden_dim, state_dim)),                 # w1
            resident((hidden_dim, 1)),                         # b1
            resident((hidden_dim, hidden_dim)),                # w2
            resident((hidden_dim, 1)),                         # b2
            resident((action_dim, hidden_dim)),                # w3
            resident((action_dim, 1)),                         # b3
        ],
        out_specs=pl.BlockSpec((tb, action_dim), lambda i: (i, 0)),
        compiler_params=pltpu.CompilerParams(
            dimension_semantics=("parallel",),
            # Padded (tb, S)/(tb, A) double buffers + lane-dense intermediates
            # are ~20-24 MiB at tb=8192: above the 16/32 MiB scoped defaults,
            # well under every target chip's physical VMEM (64 MiB on v7x).
            vmem_limit_bytes=48 * 1024 * 1024),
        cost_estimate=cost,
    )(x, w1c, b1, w2c, b2, w3c, b3)

    if b_pad != B:
        out = out[:B]
    return out


def init_actor_params(key, state_dim, hidden_dim, action_dim):
    """PyTorch nn.Linear-style init (uniform +-1/sqrt(fan_in)).

    Weights are stored (out_features, in_features) like torch, biases as
    (out_features, 1) so they broadcast over the batch/lane axis in-kernel.
    """
    keys = jax.random.split(key, 6)

    def linear(kw, kb, fan_in, fan_out):
        bound = 1.0 / math.sqrt(fan_in)
        w = jax.random.uniform(kw, (fan_out, fan_in), jnp.float32, -bound, bound)
        b = jax.random.uniform(kb, (fan_out, 1), jnp.float32, -bound, bound)
        return w, b

    w1, b1 = linear(keys[0], keys[1], state_dim, hidden_dim)
    w2, b2 = linear(keys[2], keys[3], hidden_dim, hidden_dim)
    w3, b3 = linear(keys[4], keys[5], hidden_dim, action_dim)
    return (w1, b1, w2, b2, w3, b3)


def actor_ref(state, params, max_action):
    """Pure-JAX reference for correctness check."""
    w1, b1, w2, b2, w3, b3 = params
    a = jnp.maximum(state @ w1.T + b1.T, 0.0)
    a = jnp.maximum(a @ w2.T + b2.T, 0.0)
    return max_action * jnp.tanh(a @ w3.T + b3.T)


if __name__ == "__main__":
    state_dim = 16
    hidden_dim = 32
    action_dim = 8
    max_action = 2.0

    key = jax.random.PRNGKey(0)
    k_params, k_s1, k_s2 = jax.random.split(key, 3)
    params = init_actor_params(k_params, state_dim, hidden_dim, action_dim)

    # Small batch (single 128-padded tile).
    state = jax.random.normal(k_s1, (4, state_dim), dtype=jnp.float32)
    expected = actor_ref(state, params, max_action)
    out = jax.block_until_ready(actor_forward(state, params, max_action))
    assert out.shape == (4, action_dim)
    assert jnp.allclose(out, expected, atol=1e-5, rtol=1e-5)

    # Ragged batch: exercises 128-padding, multi-block grid, megacore split.
    state2 = jax.random.normal(k_s2, (300, state_dim), dtype=jnp.float32)
    expected2 = actor_ref(state2, params, max_action)
    out2 = jax.block_until_ready(actor_forward(state2, params, max_action))
    assert out2.shape == (300, action_dim)
    assert jnp.allclose(out2, expected2, atol=1e-5, rtol=1e-5)

    # bf16 MXU fast path: f32 accumulation + f32 bias/relu/tanh, loose tol.
    out_bf16 = jax.block_until_ready(
        actor_forward(state, params, max_action, compute_dtype=jnp.bfloat16))
    assert out_bf16.shape == (4, action_dim)
    assert jnp.allclose(out_bf16, expected, atol=5e-2, rtol=5e-2)

    print("KERNEL_OK")
</pallas_src>

<mosaic_0001>
module attributes {stable_mosaic.version = 11 : i64} {
  func.func @actor_kernel(%arg0: i32, %arg1: memref<128x16xf32, #tpu.memory_space<vmem>>, %arg2: memref<32x16xf32, #tpu.memory_space<vmem>>, %arg3: memref<32x1xf32, #tpu.memory_space<vmem>>, %arg4: memref<32x32xf32, #tpu.memory_space<vmem>>, %arg5: memref<32x1xf32, #tpu.memory_space<vmem>>, %arg6: memref<8x32xf32, #tpu.memory_space<vmem>>, %arg7: memref<8x1xf32, #tpu.memory_space<vmem>>, %arg8: memref<128x8xf32, #tpu.memory_space<vmem>>) attributes {dimension_semantics = [#tpu.dimension_semantics<parallel>], iteration_bounds = array<i64: 1>, scalar_prefetch = 0 : i64, scratch_operands = 0 : i64, tpu.core_type = #tpu.core_type<tc>, window_params = [{transform_indices = @transform_0, window_bounds = array<i64: 128, 16>}, {pipeline_mode = #tpu.pipeline_mode<synchronous>, transform_indices = @transform_1, window_bounds = array<i64: 32, 16>}, {pipeline_mode = #tpu.pipeline_mode<synchronous>, transform_indices = @transform_2, window_bounds = array<i64: 32, 1>}, {pipeline_mode = #tpu.pipeline_mode<synchronous>, transform_indices = @transform_3, window_bounds = array<i64: 32, 32>}, {pipeline_mode = #tpu.pipeline_mode<synchronous>, transform_indices = @transform_4, window_bounds = array<i64: 32, 1>}, {pipeline_mode = #tpu.pipeline_mode<synchronous>, transform_indices = @transform_5, window_bounds = array<i64: 8, 32>}, {pipeline_mode = #tpu.pipeline_mode<synchronous>, transform_indices = @transform_6, window_bounds = array<i64: 8, 1>}, {transform_indices = @transform_7, window_bounds = array<i64: 128, 8>}]} {
    %c0 = arith.constant 0 : index
    %c0_0 = arith.constant 0 : index
    %0 = vector.load %arg1[%c0, %c0_0] : memref<128x16xf32, #tpu.memory_space<vmem>>, vector<128x16xf32>
    %c0_1 = arith.constant 0 : index
    %c0_2 = arith.constant 0 : index
    %1 = vector.load %arg2[%c0_1, %c0_2] : memref<32x16xf32, #tpu.memory_space<vmem>>, vector<32x16xf32>
    %cst = arith.constant dense<0.000000e+00> : vector<32x128xf32>
    %2 = tpu.matmul %1, %0, %cst {dimension_numbers = #tpu.dot_dimension_numbers<[1], [1], [0], [0], [0, 0, 1, 0], [], []>} : vector<32x16xf32>, vector<128x16xf32>, vector<32x128xf32> -> vector<32x128xf32>
    %c0_3 = arith.constant 0 : index
    %c0_4 = arith.constant 0 : index
    %3 = vector.load %arg3[%c0_3, %c0_4] : memref<32x1xf32, #tpu.memory_space<vmem>>, vector<32x1xf32>
    %4 = vector.broadcast %3 : vector<32x1xf32> to vector<32x128xf32>
    %5 = arith.addf %2, %4 : vector<32x128xf32>
    %cst_5 = arith.constant 0.000000e+00 : f32
    %6 = vector.broadcast %cst_5 : f32 to vector<32x128xf32>
    %7 = arith.maximumf %5, %6 : vector<32x128xf32>
    %c0_6 = arith.constant 0 : index
    %c0_7 = arith.constant 0 : index
    %8 = vector.load %arg4[%c0_6, %c0_7] : memref<32x32xf32, #tpu.memory_space<vmem>>, vector<32x32xf32>
    %cst_8 = arith.constant dense<0.000000e+00> : vector<32x128xf32>
    %9 = tpu.matmul %8, %7, %cst_8 {dimension_numbers = #tpu.dot_dimension_numbers<[1], [0], [0], [1], [0, 0, 1, 1], [], []>} : vector<32x32xf32>, vector<32x128xf32>, vector<32x128xf32> -> vector<32x128xf32>
    %c0_9 = arith.constant 0 : index
    %c0_10 = arith.constant 0 : index
    %10 = vector.load %arg5[%c0_9, %c0_10] : memref<32x1xf32, #tpu.memory_space<vmem>>, vector<32x1xf32>
    %11 = vector.broadcast %10 : vector<32x1xf32> to vector<32x128xf32>
    %12 = arith.addf %9, %11 : vector<32x128xf32>
    %cst_11 = arith.constant 0.000000e+00 : f32
    %13 = vector.broadcast %cst_11 : f32 to vector<32x128xf32>
    %14 = arith.maximumf %12, %13 : vector<32x128xf32>
    %c0_12 = arith.constant 0 : index
    %c0_13 = arith.constant 0 : index
    %15 = vector.load %arg6[%c0_12, %c0_13] : memref<8x32xf32, #tpu.memory_space<vmem>>, vector<8x32xf32>
    %cst_14 = arith.constant dense<0.000000e+00> : vector<8x128xf32>
    %16 = tpu.matmul %15, %14, %cst_14 {dimension_numbers = #tpu.dot_dimension_numbers<[1], [0], [0], [1], [0, 0, 1, 1], [], []>} : vector<8x32xf32>, vector<32x128xf32>, vector<8x128xf32> -> vector<8x128xf32>
    %c0_15 = arith.constant 0 : index
    %c0_16 = arith.constant 0 : index
    %17 = vector.load %arg7[%c0_15, %c0_16] : memref<8x1xf32, #tpu.memory_space<vmem>>, vector<8x1xf32>
    %18 = vector.broadcast %17 : vector<8x1xf32> to vector<8x128xf32>
    %19 = arith.addf %16, %18 : vector<8x128xf32>
    %20 = math.tanh %19 : vector<8x128xf32>
    %cst_17 = arith.constant 2.000000e+00 : f32
    %21 = vector.broadcast %cst_17 : f32 to vector<8x128xf32>
    %22 = arith.mulf %21, %20 : vector<8x128xf32>
    %23 = tpu.transpose %22, [1, 0] : vector<8x128xf32> -> vector<128x8xf32>
    %c0_18 = arith.constant 0 : index
    %c0_19 = arith.constant 0 : index
    %24 = vector.load %arg8[%c0_18, %c0_19] : memref<128x8xf32, #tpu.memory_space<vmem>>, vector<128x8xf32>
    tpu.vector_store %arg8[%c0_18, %c0_19], %23 {strides = array<i32>} : memref<128x8xf32, #tpu.memory_space<vmem>>, vector<128x8xf32>,
    return
  }
  func.func @transform_0(%arg0: i32) -> (i32, i32) {
    %c0_i32 = arith.constant 0 : i32
    %c0_i32_0 = arith.constant 0 : i32
    return %arg0, %c0_i32 : i32, i32
  }
  func.func @transform_1(%arg0: i32) -> (i32, i32) {
    %c0_i32 = arith.constant 0 : i32
    %c0_i32_0 = arith.constant 0 : i32
    %c0_i32_1 = arith.constant 0 : i32
    return %c0_i32, %c0_i32_0 : i32, i32
  }
  func.func @transform_2(%arg0: i32) -> (i32, i32) {
    %c0_i32 = arith.constant 0 : i32
    %c0_i32_0 = arith.constant 0 : i32
    %c0_i32_1 = arith.constant 0 : i32
    return %c0_i32, %c0_i32_0 : i32, i32
  }
  func.func @transform_3(%arg0: i32) -> (i32, i32) {
    %c0_i32 = arith.constant 0 : i32
    %c0_i32_0 = arith.constant 0 : i32
    %c0_i32_1 = arith.constant 0 : i32
    return %c0_i32, %c0_i32_0 : i32, i32
  }
  func.func @transform_4(%arg0: i32) -> (i32, i32) {
    %c0_i32 = arith.constant 0 : i32
    %c0_i32_0 = arith.constant 0 : i32
    %c0_i32_1 = arith.constant 0 : i32
    return %c0_i32, %c0_i32_0 : i32, i32
  }
  func.func @transform_5(%arg0: i32) -> (i32, i32) {
    %c0_i32 = arith.constant 0 : i32
    %c0_i32_0 = arith.constant 0 : i32
    %c0_i32_1 = arith.constant 0 : i32
    return %c0_i32, %c0_i32_0 : i32, i32
  }
  func.func @transform_6(%arg0: i32) -> (i32, i32) {
    %c0_i32 = arith.constant 0 : i32
    %c0_i32_0 = arith.constant 0 : i32
    %c0_i32_1 = arith.constant 0 : i32
    return %c0_i32, %c0_i32_0 : i32, i32
  }
  func.func @transform_7(%arg0: i32) -> (i32, i32) {
    %c0_i32 = arith.constant 0 : i32
    %c0_i32_0 = arith.constant 0 : i32
    return %arg0, %c0_i32 : i32, i32
  }
}

</mosaic_0001>

<llo_original>
// kernel: tpu_custom_call.1
$region0: #{tpu_custom_call.1}
  #allocation0 [shape = 'u32[]', space=smem, size = 0x4, offset = 0x4, fixed_abs, tag = 'smem constant byte address 0x4 - core index']
  #allocation1 [shape = 'u32[72,128]{1,0:T(1,128)}', space=vmem, size = 0x9000, scoped, tag = 'internal scratch']
  %s0 = inlined_call_operand.vmem [shape: f32[128,16], index: 0, kind: input, shape index: {}]
  %s1 = inlined_call_operand.vmem [shape: f32[32,16], index: 1, kind: input, shape index: {}]
  %s2 = inlined_call_operand.vmem [shape: f32[32,1], index: 2, kind: input, shape index: {}]
  %s3 = inlined_call_operand.vmem [shape: f32[32,32], index: 3, kind: input, shape index: {}]
  %s4 = inlined_call_operand.vmem [shape: f32[32,1], index: 4, kind: input, shape index: {}]
  %s5 = inlined_call_operand.vmem [shape: f32[8,32], index: 5, kind: input, shape index: {}]
  %s6 = inlined_call_operand.vmem [shape: f32[8,1], index: 6, kind: input, shape index: {}]
  %s7 = inlined_call_operand.vmem [shape: f32[128,8], index: 7, kind: output, shape index: {}]
  %s8 = sld [smem:[#allocation0]]
  $region38: #{tpu_custom_call.1} parent=0
    _
  %s10 = ssub.s32 1, %s8
  %s11 = scalar_select 0, %s10, %s8
  // Predicated region
  $region2: #{tpu_custom_call.1} parent=0 // pred_check
    _
  $region3: #{tpu_custom_call.1} parent=0 // pred_check_branch
    %13 = sbr.rel (0) target = $region5
  $region4: #{tpu_custom_call.1} parent=0 // pred_region
    _
  $region5: #{tpu_custom_call.1} parent=0 // pred_fallthru
    _
  // Predicated region
  $region6: #{tpu_custom_call.1} parent=0 // pred_check
    _
  $region7: #{tpu_custom_call.1} parent=0 // pred_check_branch
    %15 = sbr.rel (0) target = $region9
  $region8: #{tpu_custom_call.1} parent=0 // pred_region
    _
  $region9: #{tpu_custom_call.1} parent=0 // pred_fallthru
    _
  // Predicated region
  $region10: #{tpu_custom_call.1} parent=0 // pred_check
    _
  $region11: #{tpu_custom_call.1} parent=0 // pred_check_branch
    %17 = sbr.rel (0) target = $region13
  $region12: #{tpu_custom_call.1} parent=0 // pred_region
    _
  $region13: #{tpu_custom_call.1} parent=0 // pred_fallthru
    _
  // Predicated region
  $region14: #{tpu_custom_call.1} parent=0 // pred_check
    _
  $region15: #{tpu_custom_call.1} parent=0 // pred_check_branch
    %19 = sbr.rel (0) target = $region17
  $region16: #{tpu_custom_call.1} parent=0 // pred_region
    _
  $region17: #{tpu_custom_call.1} parent=0 // pred_fallthru
    _
  // Predicated region
  $region18: #{tpu_custom_call.1} parent=0 // pred_check
    _
  $region19: #{tpu_custom_call.1} parent=0 // pred_check_branch
    %21 = sbr.rel (0) target = $region21
  $region20: #{tpu_custom_call.1} parent=0 // pred_region
    _
  $region21: #{tpu_custom_call.1} parent=0 // pred_fallthru
    _
  // Predicated region
  $region22: #{tpu_custom_call.1} parent=0 // pred_check
    _
  $region23: #{tpu_custom_call.1} parent=0 // pred_check_branch
    %23 = sbr.rel (0) target = $region25
  $region24: #{tpu_custom_call.1} parent=0 // pred_region
    _
  $region25: #{tpu_custom_call.1} parent=0 // pred_fallthru
    _
  // Predicated region
  $region26: #{tpu_custom_call.1} parent=0 // pred_check
    _
  $region27: #{tpu_custom_call.1} parent=0 // pred_check_branch
    %25 = sbr.rel (0) target = $region29
  $region28: #{tpu_custom_call.1} parent=0 // pred_region
    _
  $region29: #{tpu_custom_call.1} parent=0 // pred_fallthru
    _
  %v26 = vld [vmem:[%s0] sm:$0xff]
  %v27 = vld [vmem:[%s0 + $0x8] sm:$0xff]
  %v28 = vld [vmem:[%s0 + $0x10] sm:$0xff]
  %v29 = vld [vmem:[%s0 + $0x18] sm:$0xff]
  %v30 = vld [vmem:[%s0 + $0x20] sm:$0xff]
  %v31 = vld [vmem:[%s0 + $0x28] sm:$0xff]
  %v32 = vld [vmem:[%s0 + $0x30] sm:$0xff]
  %v33 = vld [vmem:[%s0 + $0x38] sm:$0xff]
  %v34 = vld [vmem:[%s0 + $0x40] sm:$0xff]
  %v35 = vld [vmem:[%s0 + $0x48] sm:$0xff]
  %v36 = vld [vmem:[%s0 + $0x50] sm:$0xff]
  %v37 = vld [vmem:[%s0 + $0x58] sm:$0xff]
  %v38 = vld [vmem:[%s0 + $0x60] sm:$0xff]
  %v39 = vld [vmem:[%s0 + $0x68] sm:$0xff]
  %v40 = vld [vmem:[%s0 + $0x70] sm:$0xff]
  %v41 = vld [vmem:[%s0 + $0x78] sm:$0xff]
  %v42 = vld [vmem:[%s1] sm:$0xff]
  %v43 = vld [vmem:[%s1 + $0x8] sm:$0xff]
  %v44 = vld [vmem:[%s1 + $0x10] sm:$0xff]
  %v45 = vld [vmem:[%s1 + $0x18] sm:$0xff]
  %v46 = vld [vmem:[%s2] sm:$0xff]
  %v47 = vld [vmem:[%s2 + $0x8] sm:$0xff]
  %v48 = vld [vmem:[%s2 + $0x10] sm:$0xff]
  %v49 = vld [vmem:[%s2 + $0x18] sm:$0xff]
  %51 = vset.pattern.permute.xlu0 0
  %52 = vperm.xlu0 %51, %v46
  %v53 = vpop.permute.xlu0 %52
  %56 = vset.pattern.permute.xlu0 0
  %57 = vperm.xlu0 %56, %v47
  %v58 = vpop.permute.xlu0 %57
  %61 = vset.pattern.permute.xlu0 0
  %62 = vperm.xlu0 %61, %v48
  %v63 = vpop.permute.xlu0 %62
  %66 = vset.pattern.permute.xlu0 0
  %67 = vperm.xlu0 %66, %v49
  %v68 = vpop.permute.xlu0 %67
  %vm70 = vcmask 130048
  %v72 = vsel %vm70, %v42, 0
  %v75 = vsel %vm70, %v43, 0
  %v78 = vsel %vm70, %v44, 0
  %v81 = vsel %vm70, %v45, 0
  %v84 = vsel %vm70, %v26, 0
  %v87 = vsel %vm70, %v27, 0
  %v90 = vsel %vm70, %v28, 0
  %v93 = vsel %vm70, %v29, 0
  %v96 = vsel %vm70, %v30, 0
  %v99 = vsel %vm70, %v31, 0
  %v102 = vsel %vm70, %v32, 0
  %v105 = vsel %vm70, %v33, 0
  %v108 = vsel %vm70, %v34, 0
  %v111 = vsel %vm70, %v35, 0
  %v114 = vsel %vm70, %v36, 0
  %v117 = vsel %vm70, %v37, 0
  %v120 = vsel %vm70, %v38, 0
  %v123 = vsel %vm70, %v39, 0
  %v126 = vsel %vm70, %v40, 0
  %v129 = vsel %vm70, %v41, 0
  %131 = vmatpush.xpose.msra.mxu0 %v129
  %132 = vmatpush.xpose.msra.mxu0 %v126
  %133 = vmatpush.xpose.msra.mxu0 %v123
  %134 = vmatpush.xpose.msra.mxu0 %v120
  %135 = vmatpush.xpose.msra.mxu0 %v117
  %136 = vmatpush.xpose.msra.mxu0 %v114
  %137 = vmatpush.xpose.msra.mxu0 %v111
  %138 = vmatpush.xpose.msra.mxu0 %v108
  %139 = vmatpush.xpose.msra.mxu0 %v105
  %140 = vmatpush.xpose.msra.mxu0 %v102
  %141 = vmatpush.xpose.msra.mxu0 %v99
  %142 = vmatpush.xpose.msra.mxu0 %v96
  %143 = vmatpush.xpose.msra.mxu0 %v93
  %144 = vmatpush.xpose.msra.mxu0 %v90
  %145 = vmatpush.xpose.msra.mxu0 %v87
  %146 = vmatpush.xpose.msra.mxu0 %v84
  %147 = vmatmul.f32.gmra.mxu0 %v72
  %v148 = vpop.f32.mrf.mxu0
  %v149 = vadd.f32 %v53, %v148
  %150 = vmatmul.f32.gmra.mxu0 %v75
  %v151 = vpop.f32.mrf.mxu0
  %v152 = vadd.f32 %v58, %v151
  %153 = vmatmul.f32.gmra.mxu0 %v78
  %v154 = vpop.f32.mrf.mxu0
  %v155 = vadd.f32 %v63, %v154
  %156 = vmatmul.f32.gmra.mxu0 %v81
  %v157 = vpop.f32.mrf.mxu0
  %v158 = vadd.f32 %v68, %v157
  %159 = vdwg.mxu0
  %v160 = vmax.f32 %v149, 0.0
  %v161 = vmax.f32 %v152, 0.0
  %v162 = vmax.f32 %v155, 0.0
  %v163 = vmax.f32 %v158, 0.0
  %v164 = vld [vmem:[%s3] sm:$0xff]
  %v165 = vld [vmem:[%s3 + $0x8] sm:$0xff]
  %v166 = vld [vmem:[%s3 + $0x10] sm:$0xff]
  %v167 = vld [vmem:[%s3 + $0x18] sm:$0xff]
  %v168 = vld [vmem:[%s4] sm:$0xff]
  %v169 = vld [vmem:[%s4 + $0x8] sm:$0xff]
  %v170 = vld [vmem:[%s4 + $0x10] sm:$0xff]
  %v171 = vld [vmem:[%s4 + $0x18] sm:$0xff]
  %173 = vset.pattern.permute.xlu0 0
  %174 = vperm.xlu0 %173, %v168
  %v175 = vpop.permute.xlu0 %174
  %178 = vset.pattern.permute.xlu0 0
  %179 = vperm.xlu0 %178, %v169
  %v180 = vpop.permute.xlu0 %179
  %183 = vset.pattern.permute.xlu0 0
  %184 = vperm.xlu0 %183, %v170
  %v185 = vpop.permute.xlu0 %184
  %188 = vset.pattern.permute.xlu0 0
  %189 = vperm.xlu0 %188, %v171
  %v190 = vpop.permute.xlu0 %189
  %vm192 = vcmask 261120
  %v194 = vsel %vm192, %v164, 0
  %v197 = vsel %vm192, %v165, 0
  %v200 = vsel %vm192, %v166, 0
  %v203 = vsel %vm192, %v167, 0
  %205 = vmatpush.msra.mxu0 0.0
  %206 = vmatpush.msra.mxu0 0.0
  %207 = vmatpush.msra.mxu0 0.0
  %208 = vmatpush.msra.mxu0 0.0
  %209 = vmatpush.msra.mxu0 0.0
  %210 = vmatpush.msra.mxu0 0.0
  %211 = vmatpush.msra.mxu0 0.0
  %212 = vmatpush.msra.mxu0 0.0
  %213 = vmatpush.msra.mxu0 0.0
  %214 = vmatpush.msra.mxu0 0.0
  %215 = vmatpush.msra.mxu0 0.0
  %216 = vmatpush.msra.mxu0 0.0
  %217 = vmatpush.msra.mxu0 %v163
  %218 = vmatpush.msra.mxu0 %v162
  %219 = vmatpush.msra.mxu0 %v161
  %220 = vmatpush.msra.mxu0 %v160
  %221 = vmatmul.f32.gmra.mxu0 %v194
  %v222 = vpop.f32.mrf.mxu0
  %v223 = vadd.f32 %v175, %v222
  %224 = vmatmul.f32.gmra.mxu0 %v197
  %v225 = vpop.f32.mrf.mxu0
  %v226 = vadd.f32 %v180, %v225
  %227 = vmatmul.f32.gmra.mxu0 %v200
  %v228 = vpop.f32.mrf.mxu0
  %v229 = vadd.f32 %v185, %v228
  %230 = vmatmul.f32.gmra.mxu0 %v203
  %v231 = vpop.f32.mrf.mxu0
  %v232 = vadd.f32 %v190, %v231
  %233 = vdwg.mxu0
  %v234 = vmax.f32 %v223, 0.0
  %v235 = vmax.f32 %v226, 0.0
  %v236 = vmax.f32 %v229, 0.0
  %v237 = vmax.f32 %v232, 0.0
  %v238 = vld [vmem:[%s5] sm:$0xff]
  %v239 = vld [vmem:[%s6] sm:$0xff]
  %241 = vset.pattern.permute.xlu0 0
  %242 = vperm.xlu0 %241, %v239
  %v243 = vpop.permute.xlu0 %242
  %v246 = vsel %vm192, %v238, 0
  %248 = vmatpush.msra.mxu0 0.0
  %249 = vmatpush.msra.mxu0 0.0
  %250 = vmatpush.msra.mxu0 0.0
  %251 = vmatpush.msra.mxu0 0.0
  %252 = vmatpush.msra.mxu0 0.0
  %253 = vmatpush.msra.mxu0 0.0
  %254 = vmatpush.msra.mxu0 0.0
  %255 = vmatpush.msra.mxu0 0.0
  %256 = vmatpush.msra.mxu0 0.0
  %257 = vmatpush.msra.mxu0 0.0
  %258 = vmatpush.msra.mxu0 0.0
  %259 = vmatpush.msra.mxu0 0.0
  %260 = vmatpush.msra.mxu0 %v237
  %261 = vmatpush.msra.mxu0 %v236
  %262 = vmatpush.msra.mxu0 %v235
  %263 = vmatpush.msra.mxu0 %v234
  %264 = vmatmul.f32.gmra.mxu0 %v246
  %v265 = vpop.f32.mrf.mxu0
  %v266 = vadd.f32 %v243, %v265
  %267 = vdwg.mxu0
  %v268 = vtanh.pop %v266
  %v269 = vmul.f32 %v268, 2.0
  %270 = vxpose.xlu0.b32.start [1/16] %v269, 128
  %271 = vxpose.xlu0.b32.cont [2/16] 0.0, 128
  %272 = vxpose.xlu0.b32.cont [3/16] 0.0, 128
  %273 = vxpose.xlu0.b32.cont [4/16] 0.0, 128
  %274 = vxpose.xlu0.b32.cont [5/16] 0.0, 128
  %275 = vxpose.xlu0.b32.cont [6/16] 0.0, 128
  %276 = vxpose.xlu0.b32.cont [7/16] 0.0, 128
  %277 = vxpose.xlu0.b32.cont [8/16] 0.0, 128
  %278 = vxpose.xlu0.b32.cont [9/16] 0.0, 128
  %279 = vxpose.xlu0.b32.cont [10/16] 0.0, 128
  %280 = vxpose.xlu0.b32.cont [11/16] 0.0, 128
  %281 = vxpose.xlu0.b32.cont [12/16] 0.0, 128
  %282 = vxpose.xlu0.b32.cont [13/16] 0.0, 128
  %283 = vxpose.xlu0.b32.cont [14/16] 0.0, 128
  %284 = vxpose.xlu0.b32.cont [15/16] 0.0, 128
  %285 = vxpose.xlu0.b32.end [16/16] 0.0, 128
  %v286 = vpop.trf.xlu0
  %v287 = vpop.trf.xlu0
  %v288 = vpop.trf.xlu0
  %v289 = vpop.trf.xlu0
  %v290 = vpop.trf.xlu0
  %v291 = vpop.trf.xlu0
  %v292 = vpop.trf.xlu0
  %v293 = vpop.trf.xlu0
  %v294 = vpop.trf.xlu0
  %v295 = vpop.trf.xlu0
  %v296 = vpop.trf.xlu0
  %v297 = vpop.trf.xlu0
  %v298 = vpop.trf.xlu0
  %v299 = vpop.trf.xlu0
  %v300 = vpop.trf.xlu0
  %v301 = vpop.trf.xlu0
  %vm302 = vcmask 64512
  %303 = vst.msk [vmem:[%s7] sm:$0xff] %vm302, %v286
  %304 = vst.msk [vmem:[%s7 + $0x8] sm:$0xff] %vm302, %v287
  %305 = vst.msk [vmem:[%s7 + $0x10] sm:$0xff] %vm302, %v288
  %306 = vst.msk [vmem:[%s7 + $0x18] sm:$0xff] %vm302, %v289
  %307 = vst.msk [vmem:[%s7 + $0x20] sm:$0xff] %vm302, %v290
  %308 = vst.msk [vmem:[%s7 + $0x28] sm:$0xff] %vm302, %v291
  %309 = vst.msk [vmem:[%s7 + $0x30] sm:$0xff] %vm302, %v292
  %310 = vst.msk [vmem:[%s7 + $0x38] sm:$0xff] %vm302, %v293
  %311 = vst.msk [vmem:[%s7 + $0x40] sm:$0xff] %vm302, %v294
  %312 = vst.msk [vmem:[%s7 + $0x48] sm:$0xff] %vm302, %v295
  %313 = vst.msk [vmem:[%s7 + $0x50] sm:$0xff] %vm302, %v296
  %314 = vst.msk [vmem:[%s7 + $0x58] sm:$0xff] %vm302, %v297
  %315 = vst.msk [vmem:[%s7 + $0x60] sm:$0xff] %vm302, %v298
  %316 = vst.msk [vmem:[%s7 + $0x68] sm:$0xff] %vm302, %v299
  %317 = vst.msk [vmem:[%s7 + $0x70] sm:$0xff] %vm302, %v300
  %318 = vst.msk [vmem:[%s7 + $0x78] sm:$0xff] %vm302, %v301
  // Predicated region
  $region30: #{tpu_custom_call.1} parent=0 // pred_check
    _
  $region31: #{tpu_custom_call.1} parent=0 // pred_check_branch
    %320 = sbr.rel (0) target = $region33
  $region32: #{tpu_custom_call.1} parent=0 // pred_region
    _
  $region33: #{tpu_custom_call.1} parent=0 // pred_fallthru
    _
  // Predicated region
  $region34: #{tpu_custom_call.1} parent=0 // pred_check
    _
  $region35: #{tpu_custom_call.1} parent=0 // pred_check_branch
    %322 = sbr.rel (0) target = $region37
  $region36: #{tpu_custom_call.1} parent=0 // pred_region
    _
  $region37: #{tpu_custom_call.1} parent=0 // pred_fallthru
    _

</llo_original>
